<compile_context>
chip_gen: v7x
topology: tpu7x:2x2x1
jax: 0.10.0
libtpu: 0.0.40
codegen_flags: <defaults>
</compile_context>

<pallas_src>
import functools

import jax
import jax.numpy as jnp
from jax import lax
from jax.experimental import pallas as pl
from jax.experimental.pallas import tpu as pltpu


# ----------------------------------------------------------------------------
# small math helpers (pure jnp, usable inside kernels)
# ----------------------------------------------------------------------------
def _softplus(x):
    return jnp.maximum(x, 0.0) + jnp.log1p(jnp.exp(-jnp.abs(x)))


def _mish(x):
    return x * jnp.tanh(_softplus(x))


def _layernorm(x, gamma, beta, eps=1e-5):
    mean = jnp.mean(x, axis=-1, keepdims=True)
    var = jnp.mean((x - mean) ** 2, axis=-1, keepdims=True)
    return (x - mean) * lax.rsqrt(var + eps) * gamma + beta


# ----------------------------------------------------------------------------
# Kernel 1: fused embedding gather + input projection
# ----------------------------------------------------------------------------
def _embed_proj_kernel(ids_ref,      # SMEM scalar-prefetch: (TBpad,) int32
                       table_ref,    # HBM (pl.ANY): (V, E) f32
                       w_ref,        # VMEM resident: (E, 4H) bf16
                       b_ref,        # VMEM resident: (1, 4H) f32
                       out_ref,      # VMEM block: (tm, 4H) f32
                       x_buf,        # VMEM scratch: (tm, E) f32
                       sem,          # DMA semaphore (scalar)
                       *, rows_per_step):
    base = pl.program_id(0) * rows_per_step

    # Issue all row-gather DMAs for this tile, then drain them (same-size copies
    # sharing one semaphore; each wait consumes one copy's completion).
    @pl.loop(0, rows_per_step)
    def _issue(r):
        idx = ids_ref[base + r]
        pltpu.make_async_copy(table_ref.at[idx], x_buf.at[r], sem).start()

    @pl.loop(0, rows_per_step)
    def _drain(r):
        idx = ids_ref[base + r]
        pltpu.make_async_copy(table_ref.at[idx], x_buf.at[r], sem).wait()

    x = x_buf[...].astype(jnp.bfloat16)          # bf16 MXU operand, f32 accumulate
    out_ref[...] = (
        jnp.dot(x, w_ref[...], preferred_element_type=jnp.float32) + b_ref[...]
    ).astype(out_ref.dtype)


# ----------------------------------------------------------------------------
# Kernel 2: LSTM recurrence over time chunks + fused decoder on the last chunk
# Gate layout is permuted to (i, f, o, g): sigmoid over [0:3H], tanh over [3H:4H].
# ----------------------------------------------------------------------------
def _lstm_decoder_kernel(gx_ref,     # (Tc, Bp, 4H) f32 : precomputed x_t @ W_ih^T + b
                         whh_ref,    # (H, 4H) bf16     : recurrent weight (resident)
                         w1_ref, b1_ref, g1_ref, be1_ref,
                         w2_ref, b2_ref, g2_ref, be2_ref,
                         w3_ref, b3_ref,
                         out_ref,    # (Bp, Op) f32
                         h_scr, c_scr,                   # (Bp, H) f32 scratch
                         *, hidden_dim, t_chunk):
    H = hidden_dim
    t = pl.program_id(0)

    @pl.when(t == 0)
    def _():
        h_scr[...] = jnp.zeros_like(h_scr)
        c_scr[...] = jnp.zeros_like(c_scr)

    whh = whh_ref[...]

    def step(i, carry):
        h, c = carry
        gates = gx_ref[i] + jnp.dot(h.astype(jnp.bfloat16), whh,
                                    preferred_element_type=jnp.float32)
        sig = jax.nn.sigmoid(gates[:, 0:3 * H])          # one contiguous slab
        i_g = sig[:, 0:H]
        f_g = sig[:, H:2 * H]
        o_g = sig[:, 2 * H:3 * H]
        g_g = jnp.tanh(gates[:, 3 * H:4 * H])
        c = f_g * c + i_g * g_g
        h = o_g * jnp.tanh(c)
        return (h, c)

    h, c = lax.fori_loop(0, t_chunk, step, (h_scr[...], c_scr[...]), unroll=True)
    h_scr[...] = h
    c_scr[...] = c

    @pl.when(t == pl.num_programs(0) - 1)
    def _():
        y = jnp.dot(h, w1_ref[...], preferred_element_type=jnp.float32) + b1_ref[...]
        y = _mish(_layernorm(y, g1_ref[...], be1_ref[...]))
        y = jnp.dot(y, w2_ref[...], preferred_element_type=jnp.float32) + b2_ref[...]
        y = _mish(_layernorm(y, g2_ref[...], be2_ref[...]))
        out_ref[...] = (
            jnp.dot(y, w3_ref[...], preferred_element_type=jnp.float32) + b3_ref[...]
        ).astype(out_ref.dtype)


# ----------------------------------------------------------------------------
# wrapper helpers
# ----------------------------------------------------------------------------
def _round_up(x, m):
    return ((x + m - 1) // m) * m


def _largest_divisor_leq(n, cap):
    cap = max(1, min(n, cap))
    for d in range(cap, 0, -1):
        if n % d == 0:
            return d
    return 1


def _permute_gates(w, H):
    # PyTorch LSTM column order (i, f, g, o) -> (i, f, o, g)
    return jnp.concatenate(
        [w[..., 0:2 * H], w[..., 3 * H:4 * H], w[..., 2 * H:3 * H]], axis=-1)


# ----------------------------------------------------------------------------
# Forward wrapper
# ----------------------------------------------------------------------------
def lstmnet_forward(token_ids, params):
    """token_ids: (B, T) int32; params: dict of float32 weights (see init_params)."""
    B, T = token_ids.shape
    V, E = params["embedding"].shape
    H = params["w_hh_t"].shape[0]
    O = params["wd3"].shape[1]
    f32 = jnp.float32
    bf16 = jnp.bfloat16

    # --- layout padding (wrapper glue) ---
    Bp = _round_up(B, 8)                       # sublane-full batch
    Op = _round_up(max(O, 128), 128)           # lane-dense decoder output
    TB = T * Bp
    tm = TB if TB <= 256 else 256              # row tile; fits comfortably on v5e/v6e/v7x VMEM
    TBpad = _round_up(TB, tm)

    # token ids: pad batch (id 0 = valid row), time-major flatten, pad rows to tile multiple
    ids_p = jnp.zeros((Bp, T), jnp.int32).at[:B, :].set(token_ids.astype(jnp.int32))
    ids_tm = jnp.transpose(ids_p).reshape(-1)
    ids_tm = jnp.pad(ids_tm, (0, TBpad - TB))

    # gate-permuted weights; MXU operands in bf16 (f32 accumulation in-kernel)
    wi = _permute_gates(params["w_ih_t"], H).astype(bf16)                 # (E, 4H)
    wh = _permute_gates(params["w_hh_t"], H).astype(bf16)                 # (H, 4H)
    bg = _permute_gates(params["b_ih"] + params["b_hh"], H).reshape(1, 4 * H).astype(f32)

    # ---- 1. fused embedding gather + input projection, tiled over T*Bp rows ----
    gates_x = pl.pallas_call(
        functools.partial(_embed_proj_kernel, rows_per_step=tm),
        out_shape=jax.ShapeDtypeStruct((TBpad, 4 * H), f32),
        grid_spec=pltpu.PrefetchScalarGridSpec(
            num_scalar_prefetch=1,
            grid=(TBpad // tm,),
            in_specs=[pl.BlockSpec(memory_space=pl.ANY),                  # embedding table (HBM)
                      pl.BlockSpec((E, 4 * H), lambda i, ids: (0, 0)),    # W_ih^T resident
                      pl.BlockSpec((1, 4 * H), lambda i, ids: (0, 0))],   # bias resident
            out_specs=pl.BlockSpec((tm, 4 * H), lambda i, ids: (i, 0)),
            scratch_shapes=[pltpu.VMEM((tm, E), f32),
                            pltpu.SemaphoreType.DMA(())],
        ),
        compiler_params=pltpu.CompilerParams(
            dimension_semantics=("parallel",),          # independent row tiles (2 TCs on v7x)
            vmem_limit_bytes=64 * 1024 * 1024),
    )(ids_tm, params["embedding"], wi, bg)
    gx = gates_x[:TB].reshape(T, Bp, 4 * H)             # time-major for the recurrence

    # ---- 2. LSTM recurrence over time chunks + fused decoder ----
    Tc = _largest_divisor_leq(T, 16)                    # Tc timesteps per grid step (unrolled)
    wd3p = jnp.zeros((H, Op), f32).at[:, :O].set(params["wd3"])
    bd3p = jnp.zeros((1, Op), f32).at[0, :O].set(params["bd3"])
    rs = lambda v: v.reshape(1, -1)
    c0 = lambda t_: (0, 0)

    out = pl.pallas_call(
        functools.partial(_lstm_decoder_kernel, hidden_dim=H, t_chunk=Tc),
        out_shape=jax.ShapeDtypeStruct((Bp, Op), f32),
        grid_spec=pltpu.PrefetchScalarGridSpec(
            num_scalar_prefetch=0,
            grid=(T // Tc,),
            in_specs=[pl.BlockSpec((Tc, Bp, 4 * H), lambda t_: (t_, 0, 0)),
                      pl.BlockSpec((H, 4 * H), c0),      # W_hh^T resident
                      pl.BlockSpec((H, 2 * H), c0),      # decoder weights resident
                      pl.BlockSpec((1, 2 * H), c0),
                      pl.BlockSpec((1, 2 * H), c0),
                      pl.BlockSpec((1, 2 * H), c0),
                      pl.BlockSpec((2 * H, H), c0),
                      pl.BlockSpec((1, H), c0),
                      pl.BlockSpec((1, H), c0),
                      pl.BlockSpec((1, H), c0),
                      pl.BlockSpec((H, Op), c0),
                      pl.BlockSpec((1, Op), c0)],
            out_specs=pl.BlockSpec((Bp, Op), c0),
            scratch_shapes=[pltpu.VMEM((Bp, H), f32),     # h carry across chunks
                            pltpu.VMEM((Bp, H), f32)],    # c carry across chunks
        ),
        compiler_params=pltpu.CompilerParams(
            dimension_semantics=("arbitrary",),           # time is strictly sequential
            vmem_limit_bytes=64 * 1024 * 1024),
    )(gx, wh,
      params["wd1"], rs(params["bd1"]), rs(params["gd1"]), rs(params["betad1"]),
      params["wd2"], rs(params["bd2"]), rs(params["gd2"]), rs(params["betad2"]),
      wd3p, bd3p)

    # TODO(synk): padding H to a multiple of 128 would need masked LayerNorm in the
    # decoder; skipped — gate slices stay correct for any H.
    return out[:B, :O]


# ----------------------------------------------------------------------------
# Parameter construction (deterministic, kernel-friendly layouts)
# ----------------------------------------------------------------------------
def init_params(key, vocab_size, embed_dim, hidden_dim, output_dim):
    ks = jax.random.split(key, 12)
    s = 0.1
    H = hidden_dim
    return {
        "embedding": s * jax.random.normal(ks[0], (vocab_size, embed_dim), jnp.float32),
        # LSTM weights stored pre-transposed: x @ w_ih_t, h @ w_hh_t -> (.., 4H), order (i,f,g,o)
        "w_ih_t": s * jax.random.normal(ks[1], (embed_dim, 4 * H), jnp.float32),
        "w_hh_t": s * jax.random.normal(ks[2], (H, 4 * H), jnp.float32),
        "b_ih":   s * jax.random.normal(ks[3], (4 * H,), jnp.float32),
        "b_hh":   s * jax.random.normal(ks[4], (4 * H,), jnp.float32),
        # decoder (Linear weights pre-transposed to (in, out))
        "wd1": s * jax.random.normal(ks[5], (H, 2 * H), jnp.float32),
        "bd1": s * jax.random.normal(ks[6], (2 * H,), jnp.float32),
        "gd1": jnp.ones((2 * H,), jnp.float32),
        "betad1": jnp.zeros((2 * H,), jnp.float32),
        "wd2": s * jax.random.normal(ks[7], (2 * H, H), jnp.float32),
        "bd2": s * jax.random.normal(ks[8], (H,), jnp.float32),
        "gd2": jnp.ones((H,), jnp.float32),
        "betad2": jnp.zeros((H,), jnp.float32),
        "wd3": s * jax.random.normal(ks[9], (H, output_dim), jnp.float32),
        "bd3": s * jax.random.normal(ks[10], (output_dim,), jnp.float32),
    }


# ----------------------------------------------------------------------------
# Pure-JAX reference (same numerics recipe: bf16 MXU operands, f32 accumulate,
# f32 gate math / LayerNorm), standard (i,f,g,o) order on unpermuted weights.
# ----------------------------------------------------------------------------
def lstmnet_reference(token_ids, p):
    bf16 = jnp.bfloat16
    emb = p["embedding"][token_ids].astype(bf16)                 # (B, T, E)
    B, T, _ = emb.shape
    H = p["w_hh_t"].shape[0]
    wi = p["w_ih_t"].astype(bf16)
    wh = p["w_hh_t"].astype(bf16)
    gx = (jnp.einsum("bte,eh->bth", emb, wi, preferred_element_type=jnp.float32)
          + p["b_ih"] + p["b_hh"])                               # (B, T, 4H) f32

    def step(carry, g_t):
        h, c = carry
        gates = g_t + jnp.dot(h.astype(bf16), wh, preferred_element_type=jnp.float32)
        i = jax.nn.sigmoid(gates[:, 0:H])
        f = jax.nn.sigmoid(gates[:, H:2 * H])
        g = jnp.tanh(gates[:, 2 * H:3 * H])
        o = jax.nn.sigmoid(gates[:, 3 * H:4 * H])
        c = f * c + i * g
        h = o * jnp.tanh(c)
        return (h, c), None

    h0 = jnp.zeros((B, H), jnp.float32)
    c0 = jnp.zeros((B, H), jnp.float32)
    (hT, _), _ = lax.scan(step, (h0, c0), jnp.swapaxes(gx, 0, 1))

    y = _mish(_layernorm(hT @ p["wd1"] + p["bd1"], p["gd1"], p["betad1"]))
    y = _mish(_layernorm(y @ p["wd2"] + p["bd2"], p["gd2"], p["betad2"]))
    return y @ p["wd3"] + p["bd3"]


# ----------------------------------------------------------------------------
# Demo / self-test
# ----------------------------------------------------------------------------
if __name__ == "__main__":
    # Small shapes consistent with LSTMnet: batch=2, seq=8, vocab=100,
    # embedding_dim=32, hidden_dim=32, output_dim=2.
    key = jax.random.PRNGKey(0)
    k_ids, k_params = jax.random.split(key)

    B, T = 2, 8
    VOCAB, EMBED, HIDDEN, OUT = 100, 32, 32, 2

    token_ids = jax.random.randint(k_ids, (B, T), 0, VOCAB, dtype=jnp.int32)
    params = init_params(k_params, VOCAB, EMBED, HIDDEN, OUT)

    out = lstmnet_forward(token_ids, params)
    out = jax.block_until_ready(out)

    ref = lstmnet_reference(token_ids, params)
    assert out.shape == (B, OUT), f"bad shape {out.shape}"
    assert jnp.allclose(out, ref, atol=2e-3, rtol=2e-3), (
        f"mismatch vs reference\n{out}\n{ref}")

    # TODO(synk): pretrained GloVe embedding loading (get_embed_vec) is host-side
    # file I/O, not a kernel op; bidirectional path unused (module default False).
    print("KERNEL_OK")
</pallas_src>

<mosaic_0001>
module attributes {stable_mosaic.version = 11 : i64} {
  func.func @_embed_proj_kernel(%arg0: i32, %arg1: memref<64xi32, #tpu.memory_space<smem>>, %arg2: memref<100x32xf32, #tpu.memory_space<any>>, %arg3: memref<32x128xbf16, #tpu.memory_space<vmem>>, %arg4: memref<1x128xf32, #tpu.memory_space<vmem>>, %arg5: memref<64x128xf32, #tpu.memory_space<vmem>>, %arg6: memref<64x32xf32, #tpu.memory_space<vmem>>, %arg7: memref<!tpu.dma_semaphore, #tpu.memory_space<semaphore_mem>>) attributes {dimension_semantics = [#tpu.dimension_semantics<parallel>], iteration_bounds = array<i64: 1>, scalar_prefetch = 1 : i64, scratch_operands = 2 : i64, tpu.core_type = #tpu.core_type<tc>, window_params = [{}, {pipeline_mode = #tpu.pipeline_mode<synchronous>, transform_indices = @transform_1, window_bounds = array<i64: 32, 128>}, {pipeline_mode = #tpu.pipeline_mode<synchronous>, transform_indices = @transform_2, window_bounds = array<i64: 1, 128>}, {transform_indices = @transform_3, window_bounds = array<i64: 64, 128>}]} {
    %c64_i32 = arith.constant 64 : i32
    %0 = arith.muli %arg0, %c64_i32 : i32
    %c0_i32 = arith.constant 0 : i32
    %c64_i32_0 = arith.constant 64 : i32
    %1 = arith.addi %c0_i32, %c64_i32_0 : i32
    %c1_i32 = arith.constant 1 : i32
    scf.for %arg8 = %c0_i32 to %1 step %c1_i32  : i32 {
      %c1_i32_13 = arith.constant 1 : i32
      %11 = arith.muli %arg8, %c1_i32_13 : i32
      %c0_i32_14 = arith.constant 0 : i32
      %12 = arith.addi %c0_i32_14, %11 : i32
      %13 = arith.addi %0, %12 : i32
      %14 = arith.index_cast %13 : i32 to index
      %15 = memref.load %arg1[%14] : memref<64xi32, #tpu.memory_space<smem>>
      %c0_i32_15 = arith.constant 0 : i32
      %16 = tpu.memref_slice %arg2[%15, %c0_i32_15] : memref<100x32xf32, #tpu.memory_space<any>> -> memref<1x32xf32, #tpu.memory_space<any>>
      %17 = tpu.memref_squeeze %16 : memref<1x32xf32, #tpu.memory_space<any>> -> memref<32xf32, #tpu.memory_space<any>>
      %c0_i32_16 = arith.constant 0 : i32
      %18 = tpu.memref_slice %arg6[%12, %c0_i32_16] : memref<64x32xf32, #tpu.memory_space<vmem>> -> memref<1x32xf32, #tpu.memory_space<vmem>>
      %19 = tpu.memref_squeeze %18 : memref<1x32xf32, #tpu.memory_space<vmem>> -> memref<32xf32, #tpu.memory_space<vmem>>
      tpu.enqueue_dma source(%17 : memref<32xf32, #tpu.memory_space<any>>) target(%19 : memref<32xf32, #tpu.memory_space<vmem>>) target_semaphore(%arg7 : memref<!tpu.dma_semaphore, #tpu.memory_space<semaphore_mem>>)
    }
    %c64_i32_1 = arith.constant 64 : i32
    %c0_i32_2 = arith.constant 0 : i32
    %c64_i32_3 = arith.constant 64 : i32
    %2 = arith.addi %c0_i32_2, %c64_i32_3 : i32
    %c1_i32_4 = arith.constant 1 : i32
    scf.for %arg8 = %c0_i32_2 to %2 step %c1_i32_4  : i32 {
      %c1_i32_13 = arith.constant 1 : i32
      %11 = arith.muli %arg8, %c1_i32_13 : i32
      %c0_i32_14 = arith.constant 0 : i32
      %12 = arith.addi %c0_i32_14, %11 : i32
      %13 = arith.addi %0, %12 : i32
      %14 = arith.index_cast %13 : i32 to index
      %15 = memref.load %arg1[%14] : memref<64xi32, #tpu.memory_space<smem>>
      %c0_i32_15 = arith.constant 0 : i32
      %16 = tpu.memref_slice %arg2[%15, %c0_i32_15] : memref<100x32xf32, #tpu.memory_space<any>> -> memref<1x32xf32, #tpu.memory_space<any>>
      %17 = tpu.memref_squeeze %16 : memref<1x32xf32, #tpu.memory_space<any>> -> memref<32xf32, #tpu.memory_space<any>>
      %c0_i32_16 = arith.constant 0 : i32
      %18 = tpu.memref_slice %arg6[%12, %c0_i32_16] : memref<64x32xf32, #tpu.memory_space<vmem>> -> memref<1x32xf32, #tpu.memory_space<vmem>>
      %19 = tpu.memref_squeeze %18 : memref<1x32xf32, #tpu.memory_space<vmem>> -> memref<32xf32, #tpu.memory_space<vmem>>
      tpu.wait_dma2 semaphore(%arg7 : memref<!tpu.dma_semaphore, #tpu.memory_space<semaphore_mem>>) src(%17 : memref<32xf32, #tpu.memory_space<any>>) dst(%19 : memref<32xf32, #tpu.memory_space<vmem>>)
    }
    %c64_i32_5 = arith.constant 64 : i32
    %c0 = arith.constant 0 : index
    %c0_6 = arith.constant 0 : index
    %3 = vector.load %arg6[%c0, %c0_6] : memref<64x32xf32, #tpu.memory_space<vmem>>, vector<64x32xf32>
    %4 = arith.truncf %3 : vector<64x32xf32> to vector<64x32xbf16>
    %c0_7 = arith.constant 0 : index
    %c0_8 = arith.constant 0 : index
    %5 = vector.load %arg3[%c0_7, %c0_8] : memref<32x128xbf16, #tpu.memory_space<vmem>>, vector<32x128xbf16>
    %cst = arith.constant dense<0.000000e+00> : vector<64x128xf32>
    %6 = tpu.matmul %4, %5, %cst {dimension_numbers = #tpu.dot_dimension_numbers<[1], [0], [0], [1], [0, 0, 1, 1], [], []>} : vector<64x32xbf16>, vector<32x128xbf16>, vector<64x128xf32> -> vector<64x128xf32>
    %c0_9 = arith.constant 0 : index
    %c0_10 = arith.constant 0 : index
    %7 = vector.load %arg4[%c0_9, %c0_10] : memref<1x128xf32, #tpu.memory_space<vmem>>, vector<1x128xf32>
    %8 = vector.broadcast %7 : vector<1x128xf32> to vector<64x128xf32>
    %9 = arith.addf %6, %8 : vector<64x128xf32>
    %c0_11 = arith.constant 0 : index
    %c0_12 = arith.constant 0 : index
    %10 = vector.load %arg5[%c0_11, %c0_12] : memref<64x128xf32, #tpu.memory_space<vmem>>, vector<64x128xf32>
    tpu.vector_store %arg5[%c0_11, %c0_12], %9 {strides = array<i32>} : memref<64x128xf32, #tpu.memory_space<vmem>>, vector<64x128xf32>,
    return
  }
  func.func @transform_1(%arg0: i32, %arg1: memref<64xi32, #tpu.memory_space<smem>>) -> (i32, i32) {
    %c0_i32 = arith.constant 0 : i32
    %c0_i32_0 = arith.constant 0 : i32
    %c0_i32_1 = arith.constant 0 : i32
    return %c0_i32, %c0_i32_0 : i32, i32
  }
  func.func @transform_2(%arg0: i32, %arg1: memref<64xi32, #tpu.memory_space<smem>>) -> (i32, i32) {
    %c0_i32 = arith.constant 0 : i32
    %c0_i32_0 = arith.constant 0 : i32
    %c0_i32_1 = arith.constant 0 : i32
    return %c0_i32, %c0_i32_0 : i32, i32
  }
  func.func @transform_3(%arg0: i32, %arg1: memref<64xi32, #tpu.memory_space<smem>>) -> (i32, i32) {
    %c0_i32 = arith.constant 0 : i32
    %c0_i32_0 = arith.constant 0 : i32
    return %arg0, %c0_i32 : i32, i32
  }
}

</mosaic_0001>

<llo_original>
// kernel: tpu_custom_call.1
$region0: #{tpu_custom_call.1}
  #allocation0 [shape = 'u32[]', space=smem, size = 0x4, offset = 0x4, fixed_abs, tag = 'smem constant byte address 0x4 - core index']
  #allocation1 [shape = 'u32[144,128]{1,0:T(1,128)}', space=vmem, size = 0x12000, scoped, tag = 'internal scratch']
  #allocation2 [shape = 'f32[64,32]{1,0:T(8,128)}', space=vmem, size = 0x8000, scoped, tag = 'scratch operand']
  #allocation3 [shape = 's32[1]{0}', space=sflag, size = 0x4, scoped, tag = 'scratch operand']
  #allocation4 [shape = 's32[1]{0}', space=sflag, size = 0x4, scoped, tag = 'scoped memory for tpu_custom_call.1']
  #allocation5 [shape = 'u8[512]{0}', space=smem, size = 0x200, scoped, tag = 'prefetched SMEM operand 0']
  #allocation12 [shape = 's32[]', space=sflag, size = 0x4, offset = 0, fixed_abs, tag = 'sflag constant byte address 0x0 - dummy sync flag']
  #allocation13 [shape = 's32[]', space=sflag, size = 0x4, offset = 0, fixed_abs, tag = 'sflag constant byte address 0x0 - dummy sync flag']
  #allocation14 [shape = 'u32[]', space=smem, size = 0x4, offset = 0x44, fixed_abs, tag = 'smem constant byte address 0x44 - assertion arg 0']
  #allocation15 [shape = 'u32[]', space=smem, size = 0x4, offset = 0x48, fixed_abs, tag = 'smem constant byte address 0x48 - assertion arg 1']
  %s0 = inlined_call_operand.hbm [shape: s32[64], index: 0, kind: input, shape index: {}]
  %s1 = inlined_call_operand.hbm [shape: f32[100,32], index: 1, kind: input, shape index: {}]
  %s2 = inlined_call_operand.hbm [shape: bf16[32,128], index: 2, kind: input, shape index: {}]
  %s3 = inlined_call_operand.hbm [shape: f32[1,128], index: 3, kind: input, shape index: {}]
  %s4 = inlined_call_operand.hbm [shape: f32[64,128], index: 4, kind: output, shape index: {}]
  %s5 = sld [smem:[#allocation0]]
  $region44: #{tpu_custom_call.1} parent=0
    _
  %s7 = ssub.s32 1, %s5
  %s8 = scalar_select 0, %s7, %s5
  %10 = dma.hbm_to_smem %s0, 16, [#allocation5], [#allocation4]
  %11 = dma.done [#allocation4], 16
  %12 = sfence
  $region1: #{tpu_custom_call.1} parent=0
    #allocation6 [shape = 'u8[8192]{0}', space=vmem, size = 0x2000, scoped, tag = 'input window, operand 2, single buffered']
    #allocation7 [shape = 's32[1]{0}', space=sflag, size = 0x4, scoped, tag = 'scoped memory for tpu_custom_call.1']
    #allocation8 [shape = 's32[1]{0}', space=sflag, size = 0x4, scoped, tag = 'scoped memory for tpu_custom_call.1']
    #allocation9 [shape = 'u8[512]{0}', space=vmem, size = 0x400, scoped, tag = 'input window, operand 3, single buffered']
    #allocation10 [shape = 's32[1]{0}', space=sflag, size = 0x4, scoped, tag = 'scoped memory for tpu_custom_call.1']
    #allocation11 [shape = 'u8[32768]{0}', space=vmem, size = 0x8000, scoped, tag = 'output window, operand 0, single buffered']
    %13 = vsyncpa [#allocation7], 0
    %14 = vsyncpa [#allocation10], 0
    %15 = vsyncpa [#allocation8], 0
    // Predicated region
    $region2: #{tpu_custom_call.1} parent=1 // pred_check
      _
    $region3: #{tpu_custom_call.1} parent=1 // pred_check_branch
      %17 = sbr.rel (0) target = $region5
    $region4: #{tpu_custom_call.1} parent=1 // pred_region
      %s19 = ssub.s32 256, 256
      %20 = vsyncadd [#allocation7], %s19
      %s21 = sshll.u32 [#allocation6], 4
      %s22 = int_to_ptr.vmem [resolvable:$true] %s21
      %27 = dma.hbm_to_vmem [thread:$0]  %s2, 256, %s22, [#allocation7], 64, 64, 4
    $region5: #{tpu_custom_call.1} parent=1 // pred_fallthru
      _
    // Predicated region
    $region6: #{tpu_custom_call.1} parent=1 // pred_check
      _
    $region7: #{tpu_custom_call.1} parent=1 // pred_check_branch
      %29 = sbr.rel (0) target = $region9
    $region8: #{tpu_custom_call.1} parent=1 // pred_region
      %s31 = ssub.s32 16, 16
      %32 = vsyncadd [#allocation10], %s31
      %s34 = sshll.u32 [#allocation9], 4
      %s35 = int_to_ptr.vmem [resolvable:$true] %s34
      %37 = dma.hbm_to_vmem [thread:$0]  %s3, 16, %s35, [#allocation10]
    $region9: #{tpu_custom_call.1} parent=1 // pred_fallthru
      _
    // Predicated region
    $region10: #{tpu_custom_call.1} parent=1 // pred_check
      _
    $region11: #{tpu_custom_call.1} parent=1 // pred_check_branch
      %39 = sbr.rel (0) target = $region13
    $region12: #{tpu_custom_call.1} parent=1 // pred_region
      %40 = dma.done [#allocation7], 256
    $region13: #{tpu_custom_call.1} parent=1 // pred_fallthru
      _
    // Predicated region
    $region14: #{tpu_custom_call.1} parent=1 // pred_check
      _
    $region15: #{tpu_custom_call.1} parent=1 // pred_check_branch
      %42 = sbr.rel (0) target = $region17
    $region16: #{tpu_custom_call.1} parent=1 // pred_region
      %43 = dma.done [#allocation10], 16
    $region17: #{tpu_custom_call.1} parent=1 // pred_fallthru
      _
    %s45 = smul.u32 0, 64
    loop: start=0, step=1, limit=64
    $region18: #{tpu_custom_call.1} parent=1 // loop_pre_header
      _
    $region19: #{tpu_custom_call.1} parent=1 // loop_header
      %s47 = sphi 0, %s51
      %p48 = scmp.ge.s32.totalorder %s47, 64
    $region20: #{tpu_custom_call.1} parent=1 // loop_header_branch
      %50 = sbr.rel (%p48) target = $region24
    $region21: #{tpu_custom_call.1} parent=1 // loop_body
      %s52 = sadd.s32 %s45, %s47
      %s53 = sld [smem:[#allocation5 + %s52]]
      %s54 = smul.addr %s53, 16
      %s55 = scalar_lea.hbm %s1, %s54
      %s56 = scalar_lea.vmem [#allocation2], %s47
      // Predicated region
      $region25: #{tpu_custom_call.1} parent=21 // pred_check
        _
      $region26: #{tpu_custom_call.1} parent=21 // pred_check_branch
        %58 = sbr.rel target = $region28
      $region27: #{tpu_custom_call.1} parent=21 // pred_region
        %59 = sst [smem:[#allocation14]] [#allocation13]
        %60 = sst [smem:[#allocation15]] [#allocation12]
      $region28: #{tpu_custom_call.1} parent=21 // pred_fallthru
        _
      %62 = shalt.err (0)
      %s64 = sshll.u32 %s56, 4
      %s65 = int_to_ptr.vmem [resolvable:$true] %s64
      %67 = dma.hbm_to_vmem [thread:$0]  %s55, 16, %s65, [#allocation3]
    $region22: #{tpu_custom_call.1} parent=1 // loop_footer
      %s51 = sadd.s32 1, %s47
    $region23: #{tpu_custom_call.1} parent=1 // loop_footer_branch
      %46 = sbr.rel target = $region19
    $region24: #{tpu_custom_call.1} parent=1 // loop_exit
      _
    loop: start=0, step=1, limit=64
    $region29: #{tpu_custom_call.1} parent=1 // loop_pre_header
      _
    $region30: #{tpu_custom_call.1} parent=1 // loop_header
      %s69 = sphi 0, %s73
      %p70 = scmp.ge.s32.totalorder %s69, 64
    $region31: #{tpu_custom_call.1} parent=1 // loop_header_branch
      %72 = sbr.rel (%p70) target = $region35
    $region32: #{tpu_custom_call.1} parent=1 // loop_body
      %s74 = sadd.s32 %s45, %s69
      %s75 = sld [smem:[#allocation5 + %s74]]
      %77 = dma.done [#allocation3], 16
    $region33: #{tpu_custom_call.1} parent=1 // loop_footer
      %s73 = sadd.s32 1, %s69
    $region34: #{tpu_custom_call.1} parent=1 // loop_footer_branch
      %68 = sbr.rel target = $region30
    $region35: #{tpu_custom_call.1} parent=1 // loop_exit
      _
    %v78 = vld [vmem:[#allocation2] sm:$0xff]
    %v79 = vld [vmem:[#allocation2 + $0x8] sm:$0xff]
    %v80 = vld [vmem:[#allocation2 + $0x10] sm:$0xff]
    %v81 = vld [vmem:[#allocation2 + $0x18] sm:$0xff]
    %v82 = vld [vmem:[#allocation2 + $0x20] sm:$0xff]
    %v83 = vld [vmem:[#allocation2 + $0x28] sm:$0xff]
    %v84 = vld [vmem:[#allocation2 + $0x30] sm:$0xff]
    %v85 = vld [vmem:[#allocation2 + $0x38] sm:$0xff]
    %v86 = vpack.c.bf16 %v79, %v78
    %v87 = vpack.c.bf16 %v81, %v80
    %v88 = vpack.c.bf16 %v83, %v82
    %v89 = vpack.c.bf16 %v85, %v84
    %v90 = vld [vmem:[#allocation6] sm:$0xf]
    %v91 = vld [vmem:[#allocation6 + $0x4] sm:$0xf]
    %v92 = vld [vmem:[#allocation6 + $0x8] sm:$0xf]
    %v93 = vld [vmem:[#allocation6 + $0xc] sm:$0xf]
    %v94 = vld [vmem:[#allocation9] sm:$0x1]
    %v96 = vlaneseq
    %v97 = vshrl.u32 %v96, 7
    %v98 = vsub.s32 0, %v97
    %v99 = vrot.slane %v94, %v98
    %v105 = vunpack.c.l.b16 %v90
    %v106 = vunpack.c.l.b16 %v91
    %v107 = vunpack.c.l.b16 %v92
    %v108 = vunpack.c.l.b16 %v93
    %v109 = vpack.c.b16 %v106, %v105
    %v110 = vpack.c.b16 %v108, %v107
    %vm113 = vcmask 261120
    %v115 = vsel %vm113, %v86, 0
    %v118 = vsel %vm113, %v87, 0
    %v121 = vsel %vm113, %v88, 0
    %v124 = vsel %vm113, %v89, 0
    %126 = vmatprep.subr.bf16.mxu0 0
    %127 = vmatpush1.bf16.msra.mxu0 %v109
    %128 = vmatprep.subr.bf16.mxu0 0
    %129 = vmatpush1.bf16.msra.mxu0 %v110
    %130 = vmatprep.subr.bf16.mxu0 0
    %131 = vmatpush1.bf16.msra.mxu0 0
    %132 = vmatprep.subr.bf16.mxu0 0
    %133 = vmatpush1.bf16.msra.mxu0 0
    %134 = vmatprep.subr.bf16.mxu0 0
    %135 = vmatpush1.bf16.msra.mxu0 0
    %136 = vmatprep.subr.bf16.mxu0 0
    %137 = vmatpush1.bf16.msra.mxu0 0
    %138 = vmatprep.subr.bf16.mxu0 0
    %139 = vmatpush1.bf16.msra.mxu0 0
    %140 = vmatprep.subr.bf16.mxu0 0
    %141 = vmatpush1.bf16.msra.mxu0 0
    %142 = vmatprep.subr.bf16.mxu0 0
    %143 = vmatpush1.bf16.msra.mxu0 0
    %144 = vmatprep.subr.bf16.mxu0 0
    %145 = vmatpush1.bf16.msra.mxu0 0
    %146 = vmatprep.subr.bf16.mxu0 0
    %147 = vmatpush1.bf16.msra.mxu0 0
    %148 = vmatprep.subr.bf16.mxu0 0
    %149 = vmatpush1.bf16.msra.mxu0 0
    %150 = vmatprep.subr.bf16.mxu0 0
    %151 = vmatpush1.bf16.msra.mxu0 0
    %152 = vmatprep.subr.bf16.mxu0 0
    %153 = vmatpush1.bf16.msra.mxu0 0
    %154 = vmatprep.subr.bf16.mxu0 0
    %155 = vmatpush1.bf16.msra.mxu0 0
    %156 = vmatprep.subr.bf16.mxu0 0
    %157 = vmatpush1.bf16.msra.mxu0 0
    %158 = vmatprep.mubr.bf16.mxu0 0
    %159 = vmatmul.mubr.bf16.gmra.mrb[0].mxu0 %v115
    %v160 = vpop.f32.mrb[0].mxu0
    %v161 = vadd.f32 %v99, %v160
    %v162 = vpop.f32.mrb[0].mxu0
    %v163 = vpop.f32.mrb[0].mxu0
    %v164 = vadd.f32 %v99, %v163
    %v165 = vpop.f32.mrb[0].mxu0
    %166 = vmatprep.mubr.bf16.mxu0 0
    %167 = vmatmul.mubr.bf16.gmra.mrb[0].mxu0 %v118
    %v168 = vpop.f32.mrb[0].mxu0
    %v169 = vadd.f32 %v99, %v168
    %v170 = vpop.f32.mrb[0].mxu0
    %v171 = vpop.f32.mrb[0].mxu0
    %v172 = vadd.f32 %v99, %v171
    %v173 = vpop.f32.mrb[0].mxu0
    %174 = vmatprep.mubr.bf16.mxu0 0
    %175 = vmatmul.mubr.bf16.gmra.mrb[0].mxu0 %v121
    %v176 = vpop.f32.mrb[0].mxu0
    %v177 = vadd.f32 %v99, %v176
    %v178 = vpop.f32.mrb[0].mxu0
    %v179 = vpop.f32.mrb[0].mxu0
    %v180 = vadd.f32 %v99, %v179
    %v181 = vpop.f32.mrb[0].mxu0
    %182 = vmatprep.mubr.bf16.mxu0 0
    %183 = vmatmul.mubr.bf16.gmra.mrb[0].mxu0 %v124
    %v184 = vpop.f32.mrb[0].mxu0
    %v185 = vadd.f32 %v99, %v184
    %v186 = vpop.f32.mrb[0].mxu0
    %v187 = vpop.f32.mrb[0].mxu0
    %v188 = vadd.f32 %v99, %v187
    %v189 = vpop.f32.mrb[0].mxu0
    %190 = vdwg.mxu0
    %191 = vst [vmem:[#allocation11] sm:$0xff] %v161
    %192 = vst [vmem:[#allocation11 + $0x8] sm:$0xff] %v164
    %193 = vst [vmem:[#allocation11 + $0x10] sm:$0xff] %v169
    %194 = vst [vmem:[#allocation11 + $0x18] sm:$0xff] %v172
    %195 = vst [vmem:[#allocation11 + $0x20] sm:$0xff] %v177
    %196 = vst [vmem:[#allocation11 + $0x28] sm:$0xff] %v180
    %197 = vst [vmem:[#allocation11 + $0x30] sm:$0xff] %v185
    %198 = vst [vmem:[#allocation11 + $0x38] sm:$0xff] %v188
    // Predicated region
    $region36: #{tpu_custom_call.1} parent=1 // pred_check
      _
    $region37: #{tpu_custom_call.1} parent=1 // pred_check_branch
      %200 = sbr.rel (0) target = $region39
    $region38: #{tpu_custom_call.1} parent=1 // pred_region
      %s202 = ssub.s32 1024, 1024
      %203 = vsyncadd [#allocation8], %s202
      %s204 = sshll.u32 [#allocation11], 4
      %s205 = int_to_ptr.vmem [resolvable:$true] %s204
      %210 = dma.vmem_to_hbm [thread:$0]  %s205, 1024, %s4, [#allocation8], 128, 128, 8
    $region39: #{tpu_custom_call.1} parent=1 // pred_fallthru
      _
    // Predicated region
    $region40: #{tpu_custom_call.1} parent=1 // pred_check
      _
    $region41: #{tpu_custom_call.1} parent=1 // pred_check_branch
      %212 = sbr.rel (0) target = $region43
    $region42: #{tpu_custom_call.1} parent=1 // pred_region
      %213 = dma.done [#allocation8], 1024
    $region43: #{tpu_custom_call.1} parent=1 // pred_fallthru
      _
    %214 = vsyncpa [#allocation7], 1
    %215 = vsyncpa [#allocation10], 1
    %216 = vsyncpa [#allocation8], 1
  %217 = vsyncmov [#allocation3]
  %s218 = vpop.sfrf %217
  %p219 = scmp.eq.s32.totalorder %s218, 0
  %p220 = pneg %p219
  %222 = shalt.err (%p220)

</llo_original>
